<compile_context>
chip_gen: v5e
topology: v5e:2x2
jax: 0.10.0
libtpu: 0.0.40
codegen_flags: <defaults>
</compile_context>

<pallas_src>
import numpy as np

import jax
import jax.numpy as jnp
from jax import lax
from jax.experimental import pallas as pl


LAYER_LIST_INFO = {
    0: [('Conv2d', 3, 8, 3), ('ReLU',), ('MaxPool2d', 2, 2)],
    1: [('Conv2d', 8, 16, 3), ('ReLU',), ('MaxPool2d', 2, 2)],
}

_POOL = 2


# ---------------------------------------------------------------------------
# Trace-time weight preprocessing (weight-sized only, runs once per call)
# ---------------------------------------------------------------------------
def _toeplitz_rhs(w_oihw, w_in, pool=_POOL):
    """Pack a torch-layout conv weight (Co, Ci, K, K) into K MXU right-hand
    sides of shape (Win*Ci, pool*W2*Co).

    For an input laid out as x[h, wi*Ci + ci] the kernel computes
        y = sum_kh  x[kh : kh + H1, :] @ T[kh]
    and gets y[h1, pw*W2*Co + w2*Co + co] == conv_out[h1, pool*w2 + pw, co],
    i.e. the MaxPool W-axis stride is already folded into the column order.
    """
    Co, Ci, K, _ = w_oihw.shape
    W1 = w_in - K + 1
    W2 = W1 // pool
    kw = np.arange(K)[:, None, None, None]
    wi = np.arange(w_in)[None, :, None, None]
    pw = np.arange(pool)[None, None, :, None]
    w2 = np.arange(W2)[None, None, None, :]
    ind = (wi == pool * w2 + pw + kw).astype(np.float32)      # (K, Win, pool, W2)
    # t[kh, wi, ci, pw, w2, co] = w[co, ci, kh, wi - (pool*w2 + pw)] (0 outside)
    t = jnp.einsum('ocht,twpv->hwcpvo', w_oihw, jnp.asarray(ind),
                   precision=lax.Precision.HIGHEST)
    return t.reshape(K, w_in * Ci, pool * W2 * Co)


# ---------------------------------------------------------------------------
# In-kernel building blocks (traced inside the Pallas kernel)
# ---------------------------------------------------------------------------
def _conv_relu_pool(xin, t_list, b_row):
    """Fused Conv2d(valid, stride 1) + MaxPool2d(2, 2) + bias + ReLU.

    xin:    (H_in, Win*Ci) f32 value, channels fastest on the lane axis.
    t_list: K strided-Toeplitz RHS values, each (Win*Ci, 2*W2*Co).
    b_row:  (1, W2*Co) bias, tiled over W2.
    Returns (H2, W2*Co).
    """
    K = len(t_list)
    H1 = xin.shape[0] - K + 1
    H2 = H1 // _POOL
    wco = t_list[0].shape[1] // _POOL

    # Convolution: K accumulating MXU matmuls (contraction over W and Cin).
    y = jnp.dot(xin[0:H1, :], t_list[0], preferred_element_type=jnp.float32)
    for kh in range(1, K):
        y = y + jnp.dot(xin[kh:kh + H1, :], t_list[kh],
                        preferred_element_type=jnp.float32)

    # Fold MaxPool's H-axis stride-2 selection into a single 0/1 matmul:
    # rows [0:H2) of (sel @ y) are the even conv rows, rows [H2:2*H2) the odd.
    r = lax.broadcasted_iota(jnp.int32, (_POOL * H2, H1), 0)
    c = lax.broadcasted_iota(jnp.int32, (_POOL * H2, H1), 1)
    ph = jnp.where(r >= H2, 1, 0)
    sel = jnp.where(c == _POOL * (r - H2 * ph) + ph, 1.0, 0.0)
    a = jnp.dot(sel, y, preferred_element_type=jnp.float32)    # (2*H2, 2*W2*Co)

    # 2x2 max over the four (ph, pw) quadrants, then bias + ReLU (hoisted:
    # valid because the bias is shared across the window and ReLU is monotone).
    m = jnp.maximum(
        jnp.maximum(a[0:H2, 0:wco], a[0:H2, wco:2 * wco]),
        jnp.maximum(a[H2:2 * H2, 0:wco], a[H2:2 * H2, wco:2 * wco]))
    return jnp.maximum(m + b_row, 0.0)


def _dynanet_kernel(x_ref, t0_ref, b0_ref, t1_ref, b1_ref, wc_ref, bc_ref, o_ref):
    """Whole DynaNet forward (task 0 path) in one kernel invocation."""
    # Hoist all weight loads out of the (statically unrolled) batch loop.
    t0 = [t0_ref[k] for k in range(t0_ref.shape[0])]
    t1 = [t1_ref[k] for k in range(t1_ref.shape[0])]
    wc = [wc_ref[h] for h in range(wc_ref.shape[0])]
    b0 = b0_ref[...]
    b1 = b1_ref[...]
    bc = bc_ref[...]

    for n in range(x_ref.shape[0]):                  # tiny batch -> static unroll
        h0 = x_ref[n]                                # (18, 54)  = (H, W*Cin)
        h1 = _conv_relu_pool(h0, t0, b0)             # (8, 64)   = (H, W*8)
        h2 = _conv_relu_pool(h1, t1, b1)             # (3, 48)   = (H, W*16)
        # Classifier: the NCHW flatten order is pre-folded into wc's row order,
        # so logits = sum_h h2[h] @ wc[h] + bias (all VMEM resident).
        logits = bc
        for h in range(len(wc)):
            logits = logits + jnp.dot(h2[h:h + 1, :], wc[h],
                                      preferred_element_type=jnp.float32)
        o_ref[pl.ds(n, 1), :] = logits               # (1, 10) row store


# ---------------------------------------------------------------------------
# Forward wrapper: one fused pallas_call
# ---------------------------------------------------------------------------
def dynanet_forward(x_nchw, params):
    """DynaNet forward, task_idx = 0 path: level 0 -> level 1 -> classifier '0'."""
    N, Ci, H, W = x_nchw.shape
    # NCHW -> (N, H, W*C): the only activation-side glue outside the kernel.
    x3 = jnp.transpose(x_nchw, (0, 2, 3, 1)).reshape(N, H, W * Ci)

    k0 = params['conv0_w'].shape[2]
    k1 = params['conv1_w'].shape[2]
    co1 = params['conv1_w'].shape[0]
    h1p, w1p = (H - k0 + 1) // _POOL, (W - k0 + 1) // _POOL       # after level 0
    h2p, w2p = (h1p - k1 + 1) // _POOL, (w1p - k1 + 1) // _POOL   # after level 1

    t0 = _toeplitz_rhs(params['conv0_w'], W)                      # (3, 54, 128)
    b0 = jnp.tile(params['conv0_b'], w1p)[None, :]                # (1, 64)
    t1 = _toeplitz_rhs(params['conv1_w'], w1p)                    # (3, 64, 96)
    b1 = jnp.tile(params['conv1_b'], w2p)[None, :]                # (1, 48)
    # Fold the PyTorch NCHW flatten into the classifier weight: rows reordered
    # to (h, w, c) so they consume the kernel's (H, W*C) activation directly.
    n_cls = params['cls_w'].shape[0]
    wc = (params['cls_w'].reshape(n_cls, co1, h2p, w2p)
          .transpose(2, 3, 1, 0)
          .reshape(h2p, w2p * co1, n_cls))                        # (3, 48, 10)
    bc = params['cls_b'][None, :]                                 # (1, 10)

    return pl.pallas_call(
        _dynanet_kernel,
        out_shape=jax.ShapeDtypeStruct((N, n_cls), jnp.float32),
    )(x3, t0, b0, t1, b1, wc, bc)


# ---------------------------------------------------------------------------
# Parameters and pure-JAX reference (PyTorch semantics) for verification
# ---------------------------------------------------------------------------
def init_params(key):
    ks = jax.random.split(key, 6)
    return {
        'conv0_w': 0.1 * jax.random.normal(ks[0], (8, 3, 3, 3), jnp.float32),
        'conv0_b': 0.1 * jax.random.normal(ks[1], (8,), jnp.float32),
        'conv1_w': 0.1 * jax.random.normal(ks[2], (16, 8, 3, 3), jnp.float32),
        'conv1_b': 0.1 * jax.random.normal(ks[3], (16,), jnp.float32),
        'cls_w':   0.1 * jax.random.normal(ks[4], (10, 144), jnp.float32),
        'cls_b':   0.1 * jax.random.normal(ks[5], (10,), jnp.float32),
    }


def reference_forward(x, params):
    def conv(x, w, b):
        y = lax.conv_general_dilated(x, w, (1, 1), 'VALID',
                                     dimension_numbers=('NCHW', 'OIHW', 'NCHW'))
        return y + b[None, :, None, None]

    def pool(x):
        return lax.reduce_window(x, -jnp.inf, lax.max,
                                 (1, 1, 2, 2), (1, 1, 2, 2), 'VALID')

    h = pool(jnp.maximum(conv(x, params['conv0_w'], params['conv0_b']), 0.0))
    h = pool(jnp.maximum(conv(h, params['conv1_w'], params['conv1_b']), 0.0))
    feat = h.reshape(h.shape[0], -1)
    return feat @ params['cls_w'].T + params['cls_b'][None, :]


if __name__ == "__main__":
    key = jax.random.PRNGKey(0)
    kx, kp = jax.random.split(key)
    x = jax.random.normal(kx, (2, 3, 18, 18), jnp.float32)   # NCHW like PyTorch
    params = init_params(kp)

    out = jax.jit(dynanet_forward)(x, params)
    out = jax.block_until_ready(out)
    assert out.shape == (2, 10), out.shape

    ref = reference_forward(x, params)
    assert jnp.allclose(out, ref, atol=1e-3, rtol=1e-3), "mismatch vs reference"

    print("KERNEL_OK")
</pallas_src>

<mosaic_0001>
module attributes {stable_mosaic.version = 11 : i64} {
  func.func @_dynanet_kernel(%arg0: memref<2x18x54xf32, #tpu.memory_space<vmem>>, %arg1: memref<3x54x128xf32, #tpu.memory_space<vmem>>, %arg2: memref<1x64xf32, #tpu.memory_space<vmem>>, %arg3: memref<3x64x96xf32, #tpu.memory_space<vmem>>, %arg4: memref<1x48xf32, #tpu.memory_space<vmem>>, %arg5: memref<3x48x10xf32, #tpu.memory_space<vmem>>, %arg6: memref<1x10xf32, #tpu.memory_space<vmem>>, %arg7: memref<2x10xf32, #tpu.memory_space<vmem>>) attributes {dimension_semantics = [], scalar_prefetch = 0 : i64, scratch_operands = 0 : i64, tpu.core_type = #tpu.core_type<tc>} {
    %c0 = arith.constant 0 : index
    %c0_0 = arith.constant 0 : index
    %c0_1 = arith.constant 0 : index
    %0 = vector.load %arg1[%c0, %c0_0, %c0_1] : memref<3x54x128xf32, #tpu.memory_space<vmem>>, vector<1x54x128xf32>
    %1 = vector.shape_cast %0 : vector<1x54x128xf32> to vector<54x128xf32>
    %c1 = arith.constant 1 : index
    %c0_2 = arith.constant 0 : index
    %c0_3 = arith.constant 0 : index
    %2 = vector.load %arg1[%c1, %c0_2, %c0_3] : memref<3x54x128xf32, #tpu.memory_space<vmem>>, vector<1x54x128xf32>
    %3 = vector.shape_cast %2 : vector<1x54x128xf32> to vector<54x128xf32>
    %c2 = arith.constant 2 : index
    %c0_4 = arith.constant 0 : index
    %c0_5 = arith.constant 0 : index
    %4 = vector.load %arg1[%c2, %c0_4, %c0_5] : memref<3x54x128xf32, #tpu.memory_space<vmem>>, vector<1x54x128xf32>
    %5 = vector.shape_cast %4 : vector<1x54x128xf32> to vector<54x128xf32>
    %c0_6 = arith.constant 0 : index
    %c0_7 = arith.constant 0 : index
    %c0_8 = arith.constant 0 : index
    %6 = vector.load %arg3[%c0_6, %c0_7, %c0_8] : memref<3x64x96xf32, #tpu.memory_space<vmem>>, vector<1x64x96xf32>
    %7 = vector.shape_cast %6 : vector<1x64x96xf32> to vector<64x96xf32>
    %c1_9 = arith.constant 1 : index
    %c0_10 = arith.constant 0 : index
    %c0_11 = arith.constant 0 : index
    %8 = vector.load %arg3[%c1_9, %c0_10, %c0_11] : memref<3x64x96xf32, #tpu.memory_space<vmem>>, vector<1x64x96xf32>
    %9 = vector.shape_cast %8 : vector<1x64x96xf32> to vector<64x96xf32>
    %c2_12 = arith.constant 2 : index
    %c0_13 = arith.constant 0 : index
    %c0_14 = arith.constant 0 : index
    %10 = vector.load %arg3[%c2_12, %c0_13, %c0_14] : memref<3x64x96xf32, #tpu.memory_space<vmem>>, vector<1x64x96xf32>
    %11 = vector.shape_cast %10 : vector<1x64x96xf32> to vector<64x96xf32>
    %c0_15 = arith.constant 0 : index
    %c0_16 = arith.constant 0 : index
    %c0_17 = arith.constant 0 : index
    %12 = vector.load %arg5[%c0_15, %c0_16, %c0_17] : memref<3x48x10xf32, #tpu.memory_space<vmem>>, vector<1x48x10xf32>
    %13 = vector.shape_cast %12 : vector<1x48x10xf32> to vector<48x10xf32>
    %c1_18 = arith.constant 1 : index
    %c0_19 = arith.constant 0 : index
    %c0_20 = arith.constant 0 : index
    %14 = vector.load %arg5[%c1_18, %c0_19, %c0_20] : memref<3x48x10xf32, #tpu.memory_space<vmem>>, vector<1x48x10xf32>
    %15 = vector.shape_cast %14 : vector<1x48x10xf32> to vector<48x10xf32>
    %c2_21 = arith.constant 2 : index
    %c0_22 = arith.constant 0 : index
    %c0_23 = arith.constant 0 : index
    %16 = vector.load %arg5[%c2_21, %c0_22, %c0_23] : memref<3x48x10xf32, #tpu.memory_space<vmem>>, vector<1x48x10xf32>
    %17 = vector.shape_cast %16 : vector<1x48x10xf32> to vector<48x10xf32>
    %c0_24 = arith.constant 0 : index
    %c0_25 = arith.constant 0 : index
    %18 = vector.load %arg2[%c0_24, %c0_25] : memref<1x64xf32, #tpu.memory_space<vmem>>, vector<1x64xf32>
    %c0_26 = arith.constant 0 : index
    %c0_27 = arith.constant 0 : index
    %19 = vector.load %arg4[%c0_26, %c0_27] : memref<1x48xf32, #tpu.memory_space<vmem>>, vector<1x48xf32>
    %c0_28 = arith.constant 0 : index
    %c0_29 = arith.constant 0 : index
    %20 = vector.load %arg6[%c0_28, %c0_29] : memref<1x10xf32, #tpu.memory_space<vmem>>, vector<1x10xf32>
    %c0_30 = arith.constant 0 : index
    %c0_31 = arith.constant 0 : index
    %c0_32 = arith.constant 0 : index
    %21 = vector.load %arg0[%c0_30, %c0_31, %c0_32] : memref<2x18x54xf32, #tpu.memory_space<vmem>>, vector<1x18x54xf32>
    %22 = vector.shape_cast %21 : vector<1x18x54xf32> to vector<18x54xf32>
    %23 = vector.extract_strided_slice %22 {offsets = [0, 0], sizes = [16, 54], strides = [1, 1]} : vector<18x54xf32> to vector<16x54xf32>
    %cst = arith.constant dense<0.000000e+00> : vector<16x128xf32>
    %24 = tpu.matmul %23, %1, %cst {dimension_numbers = #tpu.dot_dimension_numbers<[1], [0], [0], [1], [0, 0, 1, 1], [], []>} : vector<16x54xf32>, vector<54x128xf32>, vector<16x128xf32> -> vector<16x128xf32>
    %25 = vector.extract_strided_slice %22 {offsets = [1, 0], sizes = [16, 54], strides = [1, 1]} : vector<18x54xf32> to vector<16x54xf32>
    %cst_33 = arith.constant dense<0.000000e+00> : vector<16x128xf32>
    %26 = tpu.matmul %25, %3, %cst_33 {dimension_numbers = #tpu.dot_dimension_numbers<[1], [0], [0], [1], [0, 0, 1, 1], [], []>} : vector<16x54xf32>, vector<54x128xf32>, vector<16x128xf32> -> vector<16x128xf32>
    %27 = arith.addf %24, %26 : vector<16x128xf32>
    %28 = vector.extract_strided_slice %22 {offsets = [2, 0], sizes = [16, 54], strides = [1, 1]} : vector<18x54xf32> to vector<16x54xf32>
    %cst_34 = arith.constant dense<0.000000e+00> : vector<16x128xf32>
    %29 = tpu.matmul %28, %5, %cst_34 {dimension_numbers = #tpu.dot_dimension_numbers<[1], [0], [0], [1], [0, 0, 1, 1], [], []>} : vector<16x54xf32>, vector<54x128xf32>, vector<16x128xf32> -> vector<16x128xf32>
    %30 = arith.addf %27, %29 : vector<16x128xf32>
    %31 = tpu.iota {dimensions = array<i32: 0>} : vector<16x16xi32>
    %32 = tpu.iota {dimensions = array<i32: 1>} : vector<16x16xi32>
    %c8_i32 = arith.constant 8 : i32
    %33 = vector.broadcast %c8_i32 : i32 to vector<16x16xi32>
    %34 = arith.cmpi sge, %31, %33 : vector<16x16xi32>
    %c1_i32 = arith.constant 1 : i32
    %c0_i32 = arith.constant 0 : i32
    %35 = vector.broadcast %c1_i32 : i32 to vector<16x16xi32>
    %36 = vector.broadcast %c0_i32 : i32 to vector<16x16xi32>
    %37 = arith.select %34, %35, %36 : vector<16x16xi1>, vector<16x16xi32>
    %c8_i32_35 = arith.constant 8 : i32
    %38 = vector.broadcast %c8_i32_35 : i32 to vector<16x16xi32>
    %39 = arith.muli %38, %37 : vector<16x16xi32>
    %40 = arith.subi %31, %39 : vector<16x16xi32>
    %c2_i32 = arith.constant 2 : i32
    %41 = vector.broadcast %c2_i32 : i32 to vector<16x16xi32>
    %42 = arith.muli %41, %40 : vector<16x16xi32>
    %43 = arith.addi %42, %37 : vector<16x16xi32>
    %44 = arith.cmpi eq, %32, %43 : vector<16x16xi32>
    %cst_36 = arith.constant 1.000000e+00 : f32
    %cst_37 = arith.constant 0.000000e+00 : f32
    %45 = vector.broadcast %cst_36 : f32 to vector<16x16xf32>
    %46 = vector.broadcast %cst_37 : f32 to vector<16x16xf32>
    %47 = arith.select %44, %45, %46 : vector<16x16xi1>, vector<16x16xf32>
    %cst_38 = arith.constant dense<0.000000e+00> : vector<16x128xf32>
    %48 = tpu.matmul %47, %30, %cst_38 {dimension_numbers = #tpu.dot_dimension_numbers<[1], [0], [0], [1], [0, 0, 1, 1], [], []>} : vector<16x16xf32>, vector<16x128xf32>, vector<16x128xf32> -> vector<16x128xf32>
    %49 = vector.extract_strided_slice %48 {offsets = [0, 0], sizes = [8, 64], strides = [1, 1]} : vector<16x128xf32> to vector<8x64xf32>
    %50 = vector.extract_strided_slice %48 {offsets = [0, 64], sizes = [8, 64], strides = [1, 1]} : vector<16x128xf32> to vector<8x64xf32>
    %51 = arith.maximumf %49, %50 : vector<8x64xf32>
    %52 = vector.extract_strided_slice %48 {offsets = [8, 0], sizes = [8, 64], strides = [1, 1]} : vector<16x128xf32> to vector<8x64xf32>
    %53 = vector.extract_strided_slice %48 {offsets = [8, 64], sizes = [8, 64], strides = [1, 1]} : vector<16x128xf32> to vector<8x64xf32>
    %54 = arith.maximumf %52, %53 : vector<8x64xf32>
    %55 = arith.maximumf %51, %54 : vector<8x64xf32>
    %56 = vector.broadcast %18 : vector<1x64xf32> to vector<8x64xf32>
    %57 = arith.addf %55, %56 : vector<8x64xf32>
    %cst_39 = arith.constant 0.000000e+00 : f32
    %58 = vector.broadcast %cst_39 : f32 to vector<8x64xf32>
    %59 = arith.maximumf %57, %58 : vector<8x64xf32>
    %60 = vector.extract_strided_slice %59 {offsets = [0, 0], sizes = [6, 64], strides = [1, 1]} : vector<8x64xf32> to vector<6x64xf32>
    %cst_40 = arith.constant dense<0.000000e+00> : vector<6x96xf32>
    %61 = tpu.matmul %60, %7, %cst_40 {dimension_numbers = #tpu.dot_dimension_numbers<[1], [0], [0], [1], [0, 0, 1, 1], [], []>} : vector<6x64xf32>, vector<64x96xf32>, vector<6x96xf32> -> vector<6x96xf32>
    %62 = vector.extract_strided_slice %59 {offsets = [1, 0], sizes = [6, 64], strides = [1, 1]} : vector<8x64xf32> to vector<6x64xf32>
    %cst_41 = arith.constant dense<0.000000e+00> : vector<6x96xf32>
    %63 = tpu.matmul %62, %9, %cst_41 {dimension_numbers = #tpu.dot_dimension_numbers<[1], [0], [0], [1], [0, 0, 1, 1], [], []>} : vector<6x64xf32>, vector<64x96xf32>, vector<6x96xf32> -> vector<6x96xf32>
    %64 = arith.addf %61, %63 : vector<6x96xf32>
    %65 = vector.extract_strided_slice %59 {offsets = [2, 0], sizes = [6, 64], strides = [1, 1]} : vector<8x64xf32> to vector<6x64xf32>
    %cst_42 = arith.constant dense<0.000000e+00> : vector<6x96xf32>
    %66 = tpu.matmul %65, %11, %cst_42 {dimension_numbers = #tpu.dot_dimension_numbers<[1], [0], [0], [1], [0, 0, 1, 1], [], []>} : vector<6x64xf32>, vector<64x96xf32>, vector<6x96xf32> -> vector<6x96xf32>
    %67 = arith.addf %64, %66 : vector<6x96xf32>
    %68 = tpu.iota {dimensions = array<i32: 0>} : vector<6x6xi32>
    %69 = tpu.iota {dimensions = array<i32: 1>} : vector<6x6xi32>
    %c3_i32 = arith.constant 3 : i32
    %70 = vector.broadcast %c3_i32 : i32 to vector<6x6xi32>
    %71 = arith.cmpi sge, %68, %70 : vector<6x6xi32>
    %c1_i32_43 = arith.constant 1 : i32
    %c0_i32_44 = arith.constant 0 : i32
    %72 = vector.broadcast %c1_i32_43 : i32 to vector<6x6xi32>
    %73 = vector.broadcast %c0_i32_44 : i32 to vector<6x6xi32>
    %74 = arith.select %71, %72, %73 : vector<6x6xi1>, vector<6x6xi32>
    %c3_i32_45 = arith.constant 3 : i32
    %75 = vector.broadcast %c3_i32_45 : i32 to vector<6x6xi32>
    %76 = arith.muli %75, %74 : vector<6x6xi32>
    %77 = arith.subi %68, %76 : vector<6x6xi32>
    %c2_i32_46 = arith.constant 2 : i32
    %78 = vector.broadcast %c2_i32_46 : i32 to vector<6x6xi32>
    %79 = arith.muli %78, %77 : vector<6x6xi32>
    %80 = arith.addi %79, %74 : vector<6x6xi32>
    %81 = arith.cmpi eq, %69, %80 : vector<6x6xi32>
    %cst_47 = arith.constant 1.000000e+00 : f32
    %cst_48 = arith.constant 0.000000e+00 : f32
    %82 = vector.broadcast %cst_47 : f32 to vector<6x6xf32>
    %83 = vector.broadcast %cst_48 : f32 to vector<6x6xf32>
    %84 = arith.select %81, %82, %83 : vector<6x6xi1>, vector<6x6xf32>
    %cst_49 = arith.constant dense<0.000000e+00> : vector<6x96xf32>
    %85 = tpu.matmul %84, %67, %cst_49 {dimension_numbers = #tpu.dot_dimension_numbers<[1], [0], [0], [1], [0, 0, 1, 1], [], []>} : vector<6x6xf32>, vector<6x96xf32>, vector<6x96xf32> -> vector<6x96xf32>
    %86 = vector.extract_strided_slice %85 {offsets = [0, 0], sizes = [3, 48], strides = [1, 1]} : vector<6x96xf32> to vector<3x48xf32>
    %87 = vector.extract_strided_slice %85 {offsets = [0, 48], sizes = [3, 48], strides = [1, 1]} : vector<6x96xf32> to vector<3x48xf32>
    %88 = arith.maximumf %86, %87 : vector<3x48xf32>
    %89 = vector.extract_strided_slice %85 {offsets = [3, 0], sizes = [3, 48], strides = [1, 1]} : vector<6x96xf32> to vector<3x48xf32>
    %90 = vector.extract_strided_slice %85 {offsets = [3, 48], sizes = [3, 48], strides = [1, 1]} : vector<6x96xf32> to vector<3x48xf32>
    %91 = arith.maximumf %89, %90 : vector<3x48xf32>
    %92 = arith.maximumf %88, %91 : vector<3x48xf32>
    %93 = vector.broadcast %19 : vector<1x48xf32> to vector<3x48xf32>
    %94 = arith.addf %92, %93 : vector<3x48xf32>
    %cst_50 = arith.constant 0.000000e+00 : f32
    %95 = vector.broadcast %cst_50 : f32 to vector<3x48xf32>
    %96 = arith.maximumf %94, %95 : vector<3x48xf32>
    %97 = vector.extract_strided_slice %96 {offsets = [0, 0], sizes = [1, 48], strides = [1, 1]} : vector<3x48xf32> to vector<1x48xf32>
    %cst_51 = arith.constant dense<0.000000e+00> : vector<1x10xf32>
    %98 = tpu.matmul %97, %13, %cst_51 {dimension_numbers = #tpu.dot_dimension_numbers<[1], [0], [0], [1], [0, 0, 1, 1], [], []>} : vector<1x48xf32>, vector<48x10xf32>, vector<1x10xf32> -> vector<1x10xf32>
    %99 = arith.addf %20, %98 : vector<1x10xf32>
    %100 = vector.extract_strided_slice %96 {offsets = [1, 0], sizes = [1, 48], strides = [1, 1]} : vector<3x48xf32> to vector<1x48xf32>
    %cst_52 = arith.constant dense<0.000000e+00> : vector<1x10xf32>
    %101 = tpu.matmul %100, %15, %cst_52 {dimension_numbers = #tpu.dot_dimension_numbers<[1], [0], [0], [1], [0, 0, 1, 1], [], []>} : vector<1x48xf32>, vector<48x10xf32>, vector<1x10xf32> -> vector<1x10xf32>
    %102 = arith.addf %99, %101 : vector<1x10xf32>
    %103 = vector.extract_strided_slice %96 {offsets = [2, 0], sizes = [1, 48], strides = [1, 1]} : vector<3x48xf32> to vector<1x48xf32>
    %cst_53 = arith.constant dense<0.000000e+00> : vector<1x10xf32>
    %104 = tpu.matmul %103, %17, %cst_53 {dimension_numbers = #tpu.dot_dimension_numbers<[1], [0], [0], [1], [0, 0, 1, 1], [], []>} : vector<1x48xf32>, vector<48x10xf32>, vector<1x10xf32> -> vector<1x10xf32>
    %105 = arith.addf %102, %104 : vector<1x10xf32>
    %c0_54 = arith.constant 0 : index
    %c0_55 = arith.constant 0 : index
    %106 = vector.load %arg7[%c0_54, %c0_55] : memref<2x10xf32, #tpu.memory_space<vmem>>, vector<1x10xf32>
    tpu.vector_store %arg7[%c0_54, %c0_55], %105 {strides = array<i32>} : memref<2x10xf32, #tpu.memory_space<vmem>>, vector<1x10xf32>,
    %c1_56 = arith.constant 1 : index
    %c0_57 = arith.constant 0 : index
    %c0_58 = arith.constant 0 : index
    %107 = vector.load %arg0[%c1_56, %c0_57, %c0_58] : memref<2x18x54xf32, #tpu.memory_space<vmem>>, vector<1x18x54xf32>
    %108 = vector.shape_cast %107 : vector<1x18x54xf32> to vector<18x54xf32>
    %109 = vector.extract_strided_slice %108 {offsets = [0, 0], sizes = [16, 54], strides = [1, 1]} : vector<18x54xf32> to vector<16x54xf32>
    %cst_59 = arith.constant dense<0.000000e+00> : vector<16x128xf32>
    %110 = tpu.matmul %109, %1, %cst_59 {dimension_numbers = #tpu.dot_dimension_numbers<[1], [0], [0], [1], [0, 0, 1, 1], [], []>} : vector<16x54xf32>, vector<54x128xf32>, vector<16x128xf32> -> vector<16x128xf32>
    %111 = vector.extract_strided_slice %108 {offsets = [1, 0], sizes = [16, 54], strides = [1, 1]} : vector<18x54xf32> to vector<16x54xf32>
    %cst_60 = arith.constant dense<0.000000e+00> : vector<16x128xf32>
    %112 = tpu.matmul %111, %3, %cst_60 {dimension_numbers = #tpu.dot_dimension_numbers<[1], [0], [0], [1], [0, 0, 1, 1], [], []>} : vector<16x54xf32>, vector<54x128xf32>, vector<16x128xf32> -> vector<16x128xf32>
    %113 = arith.addf %110, %112 : vector<16x128xf32>
    %114 = vector.extract_strided_slice %108 {offsets = [2, 0], sizes = [16, 54], strides = [1, 1]} : vector<18x54xf32> to vector<16x54xf32>
    %cst_61 = arith.constant dense<0.000000e+00> : vector<16x128xf32>
    %115 = tpu.matmul %114, %5, %cst_61 {dimension_numbers = #tpu.dot_dimension_numbers<[1], [0], [0], [1], [0, 0, 1, 1], [], []>} : vector<16x54xf32>, vector<54x128xf32>, vector<16x128xf32> -> vector<16x128xf32>
    %116 = arith.addf %113, %115 : vector<16x128xf32>
    %117 = tpu.iota {dimensions = array<i32: 0>} : vector<16x16xi32>
    %118 = tpu.iota {dimensions = array<i32: 1>} : vector<16x16xi32>
    %c8_i32_62 = arith.constant 8 : i32
    %119 = vector.broadcast %c8_i32_62 : i32 to vector<16x16xi32>
    %120 = arith.cmpi sge, %117, %119 : vector<16x16xi32>
    %c1_i32_63 = arith.constant 1 : i32
    %c0_i32_64 = arith.constant 0 : i32
    %121 = vector.broadcast %c1_i32_63 : i32 to vector<16x16xi32>
    %122 = vector.broadcast %c0_i32_64 : i32 to vector<16x16xi32>
    %123 = arith.select %120, %121, %122 : vector<16x16xi1>, vector<16x16xi32>
    %c8_i32_65 = arith.constant 8 : i32
    %124 = vector.broadcast %c8_i32_65 : i32 to vector<16x16xi32>
    %125 = arith.muli %124, %123 : vector<16x16xi32>
    %126 = arith.subi %117, %125 : vector<16x16xi32>
    %c2_i32_66 = arith.constant 2 : i32
    %127 = vector.broadcast %c2_i32_66 : i32 to vector<16x16xi32>
    %128 = arith.muli %127, %126 : vector<16x16xi32>
    %129 = arith.addi %128, %123 : vector<16x16xi32>
    %130 = arith.cmpi eq, %118, %129 : vector<16x16xi32>
    %cst_67 = arith.constant 1.000000e+00 : f32
    %cst_68 = arith.constant 0.000000e+00 : f32
    %131 = vector.broadcast %cst_67 : f32 to vector<16x16xf32>
    %132 = vector.broadcast %cst_68 : f32 to vector<16x16xf32>
    %133 = arith.select %130, %131, %132 : vector<16x16xi1>, vector<16x16xf32>
    %cst_69 = arith.constant dense<0.000000e+00> : vector<16x128xf32>
    %134 = tpu.matmul %133, %116, %cst_69 {dimension_numbers = #tpu.dot_dimension_numbers<[1], [0], [0], [1], [0, 0, 1, 1], [], []>} : vector<16x16xf32>, vector<16x128xf32>, vector<16x128xf32> -> vector<16x128xf32>
    %135 = vector.extract_strided_slice %134 {offsets = [0, 0], sizes = [8, 64], strides = [1, 1]} : vector<16x128xf32> to vector<8x64xf32>
    %136 = vector.extract_strided_slice %134 {offsets = [0, 64], sizes = [8, 64], strides = [1, 1]} : vector<16x128xf32> to vector<8x64xf32>
    %137 = arith.maximumf %135, %136 : vector<8x64xf32>
    %138 = vector.extract_strided_slice %134 {offsets = [8, 0], sizes = [8, 64], strides = [1, 1]} : vector<16x128xf32> to vector<8x64xf32>
    %139 = vector.extract_strided_slice %134 {offsets = [8, 64], sizes = [8, 64], strides = [1, 1]} : vector<16x128xf32> to vector<8x64xf32>
    %140 = arith.maximumf %138, %139 : vector<8x64xf32>
    %141 = arith.maximumf %137, %140 : vector<8x64xf32>
    %142 = vector.broadcast %18 : vector<1x64xf32> to vector<8x64xf32>
    %143 = arith.addf %141, %142 : vector<8x64xf32>
    %cst_70 = arith.constant 0.000000e+00 : f32
    %144 = vector.broadcast %cst_70 : f32 to vector<8x64xf32>
    %145 = arith.maximumf %143, %144 : vector<8x64xf32>
    %146 = vector.extract_strided_slice %145 {offsets = [0, 0], sizes = [6, 64], strides = [1, 1]} : vector<8x64xf32> to vector<6x64xf32>
    %cst_71 = arith.constant dense<0.000000e+00> : vector<6x96xf32>
    %147 = tpu.matmul %146, %7, %cst_71 {dimension_numbers = #tpu.dot_dimension_numbers<[1], [0], [0], [1], [0, 0, 1, 1], [], []>} : vector<6x64xf32>, vector<64x96xf32>, vector<6x96xf32> -> vector<6x96xf32>
    %148 = vector.extract_strided_slice %145 {offsets = [1, 0], sizes = [6, 64], strides = [1, 1]} : vector<8x64xf32> to vector<6x64xf32>
    %cst_72 = arith.constant dense<0.000000e+00> : vector<6x96xf32>
    %149 = tpu.matmul %148, %9, %cst_72 {dimension_numbers = #tpu.dot_dimension_numbers<[1], [0], [0], [1], [0, 0, 1, 1], [], []>} : vector<6x64xf32>, vector<64x96xf32>, vector<6x96xf32> -> vector<6x96xf32>
    %150 = arith.addf %147, %149 : vector<6x96xf32>
    %151 = vector.extract_strided_slice %145 {offsets = [2, 0], sizes = [6, 64], strides = [1, 1]} : vector<8x64xf32> to vector<6x64xf32>
    %cst_73 = arith.constant dense<0.000000e+00> : vector<6x96xf32>
    %152 = tpu.matmul %151, %11, %cst_73 {dimension_numbers = #tpu.dot_dimension_numbers<[1], [0], [0], [1], [0, 0, 1, 1], [], []>} : vector<6x64xf32>, vector<64x96xf32>, vector<6x96xf32> -> vector<6x96xf32>
    %153 = arith.addf %150, %152 : vector<6x96xf32>
    %154 = tpu.iota {dimensions = array<i32: 0>} : vector<6x6xi32>
    %155 = tpu.iota {dimensions = array<i32: 1>} : vector<6x6xi32>
    %c3_i32_74 = arith.constant 3 : i32
    %156 = vector.broadcast %c3_i32_74 : i32 to vector<6x6xi32>
    %157 = arith.cmpi sge, %154, %156 : vector<6x6xi32>
    %c1_i32_75 = arith.constant 1 : i32
    %c0_i32_76 = arith.constant 0 : i32
    %158 = vector.broadcast %c1_i32_75 : i32 to vector<6x6xi32>
    %159 = vector.broadcast %c0_i32_76 : i32 to vector<6x6xi32>
    %160 = arith.select %157, %158, %159 : vector<6x6xi1>, vector<6x6xi32>
    %c3_i32_77 = arith.constant 3 : i32
    %161 = vector.broadcast %c3_i32_77 : i32 to vector<6x6xi32>
    %162 = arith.muli %161, %160 : vector<6x6xi32>
    %163 = arith.subi %154, %162 : vector<6x6xi32>
    %c2_i32_78 = arith.constant 2 : i32
    %164 = vector.broadcast %c2_i32_78 : i32 to vector<6x6xi32>
    %165 = arith.muli %164, %163 : vector<6x6xi32>
    %166 = arith.addi %165, %160 : vector<6x6xi32>
    %167 = arith.cmpi eq, %155, %166 : vector<6x6xi32>
    %cst_79 = arith.constant 1.000000e+00 : f32
    %cst_80 = arith.constant 0.000000e+00 : f32
    %168 = vector.broadcast %cst_79 : f32 to vector<6x6xf32>
    %169 = vector.broadcast %cst_80 : f32 to vector<6x6xf32>
    %170 = arith.select %167, %168, %169 : vector<6x6xi1>, vector<6x6xf32>
    %cst_81 = arith.constant dense<0.000000e+00> : vector<6x96xf32>
    %171 = tpu.matmul %170, %153, %cst_81 {dimension_numbers = #tpu.dot_dimension_numbers<[1], [0], [0], [1], [0, 0, 1, 1], [], []>} : vector<6x6xf32>, vector<6x96xf32>, vector<6x96xf32> -> vector<6x96xf32>
    %172 = vector.extract_strided_slice %171 {offsets = [0, 0], sizes = [3, 48], strides = [1, 1]} : vector<6x96xf32> to vector<3x48xf32>
    %173 = vector.extract_strided_slice %171 {offsets = [0, 48], sizes = [3, 48], strides = [1, 1]} : vector<6x96xf32> to vector<3x48xf32>
    %174 = arith.maximumf %172, %173 : vector<3x48xf32>
    %175 = vector.extract_strided_slice %171 {offsets = [3, 0], sizes = [3, 48], strides = [1, 1]} : vector<6x96xf32> to vector<3x48xf32>
    %176 = vector.extract_strided_slice %171 {offsets = [3, 48], sizes = [3, 48], strides = [1, 1]} : vector<6x96xf32> to vector<3x48xf32>
    %177 = arith.maximumf %175, %176 : vector<3x48xf32>
    %178 = arith.maximumf %174, %177 : vector<3x48xf32>
    %179 = vector.broadcast %19 : vector<1x48xf32> to vector<3x48xf32>
    %180 = arith.addf %178, %179 : vector<3x48xf32>
    %cst_82 = arith.constant 0.000000e+00 : f32
    %181 = vector.broadcast %cst_82 : f32 to vector<3x48xf32>
    %182 = arith.maximumf %180, %181 : vector<3x48xf32>
    %183 = vector.extract_strided_slice %182 {offsets = [0, 0], sizes = [1, 48], strides = [1, 1]} : vector<3x48xf32> to vector<1x48xf32>
    %cst_83 = arith.constant dense<0.000000e+00> : vector<1x10xf32>
    %184 = tpu.matmul %183, %13, %cst_83 {dimension_numbers = #tpu.dot_dimension_numbers<[1], [0], [0], [1], [0, 0, 1, 1], [], []>} : vector<1x48xf32>, vector<48x10xf32>, vector<1x10xf32> -> vector<1x10xf32>
    %185 = arith.addf %20, %184 : vector<1x10xf32>
    %186 = vector.extract_strided_slice %182 {offsets = [1, 0], sizes = [1, 48], strides = [1, 1]} : vector<3x48xf32> to vector<1x48xf32>
    %cst_84 = arith.constant dense<0.000000e+00> : vector<1x10xf32>
    %187 = tpu.matmul %186, %15, %cst_84 {dimension_numbers = #tpu.dot_dimension_numbers<[1], [0], [0], [1], [0, 0, 1, 1], [], []>} : vector<1x48xf32>, vector<48x10xf32>, vector<1x10xf32> -> vector<1x10xf32>
    %188 = arith.addf %185, %187 : vector<1x10xf32>
    %189 = vector.extract_strided_slice %182 {offsets = [2, 0], sizes = [1, 48], strides = [1, 1]} : vector<3x48xf32> to vector<1x48xf32>
    %cst_85 = arith.constant dense<0.000000e+00> : vector<1x10xf32>
    %190 = tpu.matmul %189, %17, %cst_85 {dimension_numbers = #tpu.dot_dimension_numbers<[1], [0], [0], [1], [0, 0, 1, 1], [], []>} : vector<1x48xf32>, vector<48x10xf32>, vector<1x10xf32> -> vector<1x10xf32>
    %191 = arith.addf %188, %190 : vector<1x10xf32>
    %c1_86 = arith.constant 1 : index
    %c0_87 = arith.constant 0 : index
    %192 = vector.load %arg7[%c1_86, %c0_87] : memref<2x10xf32, #tpu.memory_space<vmem>>, vector<1x10xf32>
    tpu.vector_store %arg7[%c1_86, %c0_87], %191 {strides = array<i32>} : memref<2x10xf32, #tpu.memory_space<vmem>>, vector<1x10xf32>,
    return
  }
}

</mosaic_0001>

<llo_original>
// kernel: tile.13
$region0: #{tile.13}
  #allocation0 [shape = 's32[1]{0}', space=sflag, size = 0x4, scoped, tag = 'scoped memory for tile.13']
  %s0 = inlined_call_operand.vmem [shape: f32[8], index: 0, kind: input, shape index: {}]
  %s1 = inlined_call_operand.vmem [shape: f32[8,8], index: 1, kind: output, shape index: {}]
  // Predicated region
  $region2: #{tile.13} parent=0 // pred_check
    _
  $region3: #{tile.13} parent=0 // pred_check_branch
    %3 = sbr.rel (0) target = $region5
  $region4: #{tile.13} parent=0 // pred_region
    _
  $region5: #{tile.13} parent=0 // pred_fallthru
    _
  %v4 = vld [vmem:[%s0] ss:$0 sm:$0xff]
  %5 = vst [vmem:[%s1] sm:$0xff] %v4

// kernel: tile.14
$region0: #{tile.14}
  %s0 = inlined_call_operand.vmem [shape: f32[8,8], index: 0, kind: input, shape index: {}]
  %s1 = inlined_call_operand.vmem [shape: f32[1,64], index: 1, kind: output, shape index: {}]
  $region1: #{tile.14} parent=0
    #allocation0 [shape = 'u8[4096]{0}', space=vmem, size = 0x1000, scoped, tag = 'scoped mem for output reshape']
    %v2 = vld [vmem:[%s0] sm:$0x1]
    %vm3 = vcmask 64512
    %4 = vst.msk [vmem:[#allocation0] sm:$0x1] %vm3, %v2
    %s5 = scalar_lea.vmem %s0, 7
    %v6 = vld [vmem:[%s5] sm:$0x1]
    %7 = vrot.lane.b32.xlu0 %v6, 56
    %v8 = vpop.permute.xlu0 %7
    %vm9 = vcmask 523712
    %10 = vst.msk [vmem:[#allocation0] sm:$0x1] %vm9, %v8
    %s11 = scalar_lea.vmem %s0, 6
    %v12 = vld [vmem:[%s11] sm:$0x1]
    %13 = vrot.lane.b32.xlu0 %v12, 48
    %v14 = vpop.permute.xlu0 %13
    %vm15 = vcmask 458112
    %16 = vst.msk [vmem:[#allocation0] sm:$0x1] %vm15, %v14
    %s17 = scalar_lea.vmem %s0, 5
    %v18 = vld [vmem:[%s17] sm:$0x1]
    %19 = vrot.lane.b32.xlu0 %v18, 40
    %v20 = vpop.permute.xlu0 %19
    %vm21 = vcmask 392512
    %22 = vst.msk [vmem:[#allocation0] sm:$0x1] %vm21, %v20
    %s23 = scalar_lea.vmem %s0, 4
    %v24 = vld [vmem:[%s23] sm:$0x1]
    %25 = vrot.lane.b32.xlu0 %v24, 32
    %v26 = vpop.permute.xlu0 %25
    %vm27 = vcmask 326912
    %28 = vst.msk [vmem:[#allocation0] sm:$0x1] %vm27, %v26
    %s29 = scalar_lea.vmem %s0, 3
    %v30 = vld [vmem:[%s29] sm:$0x1]
    %31 = vrot.lane.b32.xlu0 %v30, 24
    %v32 = vpop.permute.xlu0 %31
    %vm33 = vcmask 261312
    %34 = vst.msk [vmem:[#allocation0] sm:$0x1] %vm33, %v32
    %s35 = scalar_lea.vmem %s0, 2
    %v36 = vld [vmem:[%s35] sm:$0x1]
    %37 = vrot.lane.b32.xlu0 %v36, 16
    %v38 = vpop.permute.xlu0 %37
    %vm39 = vcmask 195712
    %40 = vst.msk [vmem:[#allocation0] sm:$0x1] %vm39, %v38
    %s41 = scalar_lea.vmem %s0, 1
    %v42 = vld [vmem:[%s41] sm:$0x1]
    %43 = vrot.lane.b32.xlu0 %v42, 8
    %v44 = vpop.permute.xlu0 %43
    %vm45 = vcmask 130112
    %46 = vst.msk [vmem:[#allocation0] sm:$0x1] %vm45, %v44
    %s48 = ssub.s32 2, 1
    %v49 = vld [vmem:[#allocation0] sm:%s48]
    %s51 = ssub.s32 2, 1
    %52 = vst [vmem:[%s1] sm:%s51] %v49

// kernel: tile.18
$region0: #{tile.18}
  #allocation0 [shape = 's32[1]{0}', space=sflag, size = 0x4, scoped, tag = 'scoped memory for tile.18']
  %s0 = inlined_call_operand.vmem [shape: f32[16], index: 0, kind: input, shape index: {}]
  %s1 = inlined_call_operand.vmem [shape: f32[3,16], index: 1, kind: output, shape index: {}]
  // Predicated region
  $region2: #{tile.18} parent=0 // pred_check
    _
  $region3: #{tile.18} parent=0 // pred_check_branch
    %3 = sbr.rel (0) target = $region5
  $region4: #{tile.18} parent=0 // pred_region
    _
  $region5: #{tile.18} parent=0 // pred_fallthru
    _
  %v4 = vld [vmem:[%s0] ss:$0 sm:$0xff]
  %5 = vst [vmem:[%s1] sm:$0xf] %v4

// kernel: tile.19
$region0: #{tile.19}
  %s0 = inlined_call_operand.vmem [shape: f32[3,16], index: 0, kind: input, shape index: {}]
  %s1 = inlined_call_operand.vmem [shape: f32[1,48], index: 1, kind: output, shape index: {}]
  $region1: #{tile.19} parent=0
    #allocation0 [shape = 'u8[4096]{0}', space=vmem, size = 0x1000, scoped, tag = 'scoped mem for output reshape']
    #allocation1 [shape = 'u8[4096]{0}', space=vmem, size = 0x1000, scoped, tag = 'scoped mem for input reshape']
    %s3 = ssub.s32 16, 1
    %v4 = vld [vmem:[%s0] sm:%s3]
    %5 = vst [vmem:[#allocation1] sm:%s3] %v4
    %v6 = vld [vmem:[#allocation1] sm:$0x1]
    %vm7 = vcmask 130048
    %8 = vst.msk [vmem:[#allocation0] sm:$0x1] %vm7, %v6
    %s9 = scalar_lea.vmem [#allocation1], 2
    %v10 = vld [vmem:[%s9] sm:$0x1]
    %11 = vrot.lane.b32.xlu0 %v10, 32
    %v12 = vpop.permute.xlu0 %11
    %vm13 = vcmask 392448
    %14 = vst.msk [vmem:[#allocation0] sm:$0x1] %vm13, %v12
    %s15 = scalar_lea.vmem [#allocation1], 1
    %v16 = vld [vmem:[%s15] sm:$0x1]
    %17 = vrot.lane.b32.xlu0 %v16, 16
    %v18 = vpop.permute.xlu0 %17
    %vm19 = vcmask 261248
    %20 = vst.msk [vmem:[#allocation0] sm:$0x1] %vm19, %v18
    %s22 = ssub.s32 2, 1
    %v23 = vld [vmem:[#allocation0] sm:%s22]
    %s25 = ssub.s32 2, 1
    %26 = vst [vmem:[%s1] sm:%s25] %v23

// kernel: dynanet_forward.1
$region0: #{dynanet_forward.1}
  #allocation0 [shape = 'u32[]', space=smem, size = 0x4, offset = 0x4, fixed_abs, tag = 'smem constant byte address 0x4 - core index']
  #allocation1 [shape = 'u32[72,128]{1,0:T(1,128)}', space=vmem, size = 0x9000, scoped, tag = 'internal scratch']
  %s0 = inlined_call_operand.vmem [shape: f32[2,18,54], index: 0, kind: input, shape index: {}]
  %s1 = inlined_call_operand.vmem [shape: f32[3,54,128], index: 1, kind: input, shape index: {}]
  %s2 = inlined_call_operand.vmem [shape: f32[1,64], index: 2, kind: input, shape index: {}]
  %s3 = inlined_call_operand.vmem [shape: f32[3,64,96], index: 3, kind: input, shape index: {}]
  %s4 = inlined_call_operand.vmem [shape: f32[1,48], index: 4, kind: input, shape index: {}]
  %s5 = inlined_call_operand.vmem [shape: f32[3,48,10], index: 5, kind: input, shape index: {}]
  %s6 = inlined_call_operand.vmem [shape: f32[1,10], index: 6, kind: input, shape index: {}]
  %s7 = inlined_call_operand.hbm [shape: f32[2,10], index: 7, kind: output, shape index: {}]
  %s8 = sld [smem:[#allocation0]]
  $region38: #{dynanet_forward.1} parent=0
    _
  %s10 = ssub.s32 1, %s8
  %s11 = scalar_select 0, %s10, %s8
  $region1: #{dynanet_forward.1} parent=0
    #allocation2 [shape = 'u8[1024]{0}', space=vmem, size = 0x400, scoped, tag = 'output window, operand 0, single buffered']
    #allocation3 [shape = 's32[1]{0}', space=sflag, size = 0x4, scoped, tag = 'scoped memory for dynanet_forward.1']
    %12 = vsyncpa [#allocation3], 0
    // Predicated region
    $region2: #{dynanet_forward.1} parent=1 // pred_check
      _
    $region3: #{dynanet_forward.1} parent=1 // pred_check_branch
      %14 = sbr.rel (0) target = $region5
    $region4: #{dynanet_forward.1} parent=1 // pred_region
      _
    $region5: #{dynanet_forward.1} parent=1 // pred_fallthru
      _
    // Predicated region
    $region6: #{dynanet_forward.1} parent=1 // pred_check
      _
    $region7: #{dynanet_forward.1} parent=1 // pred_check_branch
      %16 = sbr.rel (0) target = $region9
    $region8: #{dynanet_forward.1} parent=1 // pred_region
      _
    $region9: #{dynanet_forward.1} parent=1 // pred_fallthru
      _
    // Predicated region
    $region10: #{dynanet_forward.1} parent=1 // pred_check
      _
    $region11: #{dynanet_forward.1} parent=1 // pred_check_branch
      %18 = sbr.rel (0) target = $region13
    $region12: #{dynanet_forward.1} parent=1 // pred_region
      _
    $region13: #{dynanet_forward.1} parent=1 // pred_fallthru
      _
    // Predicated region
    $region14: #{dynanet_forward.1} parent=1 // pred_check
      _
    $region15: #{dynanet_forward.1} parent=1 // pred_check_branch
      %20 = sbr.rel (0) target = $region17
    $region16: #{dynanet_forward.1} parent=1 // pred_region
      _
    $region17: #{dynanet_forward.1} parent=1 // pred_fallthru
      _
    // Predicated region
    $region18: #{dynanet_forward.1} parent=1 // pred_check
      _
    $region19: #{dynanet_forward.1} parent=1 // pred_check_branch
      %22 = sbr.rel (0) target = $region21
    $region20: #{dynanet_forward.1} parent=1 // pred_region
      _
    $region21: #{dynanet_forward.1} parent=1 // pred_fallthru
      _
    // Predicated region
    $region22: #{dynanet_forward.1} parent=1 // pred_check
      _
    $region23: #{dynanet_forward.1} parent=1 // pred_check_branch
      %24 = sbr.rel (0) target = $region25
    $region24: #{dynanet_forward.1} parent=1 // pred_region
      _
    $region25: #{dynanet_forward.1} parent=1 // pred_fallthru
      _
    // Predicated region
    $region26: #{dynanet_forward.1} parent=1 // pred_check
      _
    $region27: #{dynanet_forward.1} parent=1 // pred_check_branch
      %26 = sbr.rel (0) target = $region29
    $region28: #{dynanet_forward.1} parent=1 // pred_region
      _
    $region29: #{dynanet_forward.1} parent=1 // pred_fallthru
      _
    %v27 = vld [vmem:[%s1] sm:$0xff]
    %v28 = vld [vmem:[%s1 + $0x8] sm:$0xff]
    %v29 = vld [vmem:[%s1 + $0x10] sm:$0xff]
    %v30 = vld [vmem:[%s1 + $0x18] sm:$0xff]
    %v31 = vld [vmem:[%s1 + $0x20] sm:$0xff]
    %v32 = vld [vmem:[%s1 + $0x28] sm:$0xff]
    %v33 = vld [vmem:[%s1 + $0x30] sm:$0x3f]
    %s34 = scalar_lea.vmem %s1, 56
    %v35 = vld [vmem:[%s34] sm:$0xff]
    %v36 = vld [vmem:[%s34 + $0x8] sm:$0xff]
    %v37 = vld [vmem:[%s34 + $0x10] sm:$0xff]
    %v38 = vld [vmem:[%s34 + $0x18] sm:$0xff]
    %v39 = vld [vmem:[%s34 + $0x20] sm:$0xff]
    %v40 = vld [vmem:[%s34 + $0x28] sm:$0xff]
    %v41 = vld [vmem:[%s34 + $0x30] sm:$0x3f]
    %s42 = scalar_lea.vmem %s1, 112
    %v43 = vld [vmem:[%s42] sm:$0xff]
    %v44 = vld [vmem:[%s42 + $0x8] sm:$0xff]
    %v45 = vld [vmem:[%s42 + $0x10] sm:$0xff]
    %v46 = vld [vmem:[%s42 + $0x18] sm:$0xff]
    %v47 = vld [vmem:[%s42 + $0x20] sm:$0xff]
    %v48 = vld [vmem:[%s42 + $0x28] sm:$0xff]
    %v49 = vld [vmem:[%s42 + $0x30] sm:$0x3f]
    %v50 = vld [vmem:[%s3] sm:$0xff]
    %v51 = vld [vmem:[%s3 + $0x8] sm:$0xff]
    %v52 = vld [vmem:[%s3 + $0x10] sm:$0xff]
    %v53 = vld [vmem:[%s3 + $0x18] sm:$0xff]
    %v54 = vld [vmem:[%s3 + $0x20] sm:$0xff]
    %v55 = vld [vmem:[%s3 + $0x28] sm:$0xff]
    %v56 = vld [vmem:[%s3 + $0x30] sm:$0xff]
    %v57 = vld [vmem:[%s3 + $0x38] sm:$0xff]
    %s58 = scalar_lea.vmem %s3, 64
    %v59 = vld [vmem:[%s58] sm:$0xff]
    %v60 = vld [vmem:[%s58 + $0x8] sm:$0xff]
    %v61 = vld [vmem:[%s58 + $0x10] sm:$0xff]
    %v62 = vld [vmem:[%s58 + $0x18] sm:$0xff]
    %v63 = vld [vmem:[%s58 + $0x20] sm:$0xff]
    %v64 = vld [vmem:[%s58 + $0x28] sm:$0xff]
    %v65 = vld [vmem:[%s58 + $0x30] sm:$0xff]
    %v66 = vld [vmem:[%s58 + $0x38] sm:$0xff]
    %s67 = scalar_lea.vmem %s3, 128
    %v68 = vld [vmem:[%s67] sm:$0xff]
    %v69 = vld [vmem:[%s67 + $0x8] sm:$0xff]
    %v70 = vld [vmem:[%s67 + $0x10] sm:$0xff]
    %v71 = vld [vmem:[%s67 + $0x18] sm:$0xff]
    %v72 = vld [vmem:[%s67 + $0x20] sm:$0xff]
    %v73 = vld [vmem:[%s67 + $0x28] sm:$0xff]
    %v74 = vld [vmem:[%s67 + $0x30] sm:$0xff]
    %v75 = vld [vmem:[%s67 + $0x38] sm:$0xff]
    %v76 = vld [vmem:[%s5] sm:$0xff]
    %v77 = vld [vmem:[%s5 + $0x8] sm:$0xff]
    %v78 = vld [vmem:[%s5 + $0x10] sm:$0xff]
    %v79 = vld [vmem:[%s5 + $0x18] sm:$0xff]
    %v80 = vld [vmem:[%s5 + $0x20] sm:$0xff]
    %v81 = vld [vmem:[%s5 + $0x28] sm:$0xff]
    %s82 = scalar_lea.vmem %s5, 48
    %v83 = vld [vmem:[%s82] sm:$0xff]
    %v84 = vld [vmem:[%s82 + $0x8] sm:$0xff]
    %v85 = vld [vmem:[%s82 + $0x10] sm:$0xff]
    %v86 = vld [vmem:[%s82 + $0x18] sm:$0xff]
    %v87 = vld [vmem:[%s82 + $0x20] sm:$0xff]
    %v88 = vld [vmem:[%s82 + $0x28] sm:$0xff]
    %s89 = scalar_lea.vmem %s5, 96
    %v90 = vld [vmem:[%s89] sm:$0xff]
    %v91 = vld [vmem:[%s89 + $0x8] sm:$0xff]
    %v92 = vld [vmem:[%s89 + $0x10] sm:$0xff]
    %v93 = vld [vmem:[%s89 + $0x18] sm:$0xff]
    %v94 = vld [vmem:[%s89 + $0x20] sm:$0xff]
    %v95 = vld [vmem:[%s89 + $0x28] sm:$0xff]
    %v96 = vld [vmem:[%s2] sm:$0x1]
    %v97 = vld [vmem:[%s4] sm:$0x1]
    %v98 = vld [vmem:[%s6] sm:$0x1]
    %v99 = vld [vmem:[%s0] sm:$0xff]
    %v100 = vld [vmem:[%s0 + $0x8] sm:$0xff]
    %v101 = vld [vmem:[%s0 + $0x10] sm:$0x3]
    %vm105 = vcmask 1046528
    %v106 = vrot.slane %v99, 1
    %v107 = vrot.slane %v100, 1
    %v108 = vsel %vm105, %v106, %v107
    %v109 = vrot.slane %v101, 1
    %v110 = vsel %vm105, %v107, %v109
    %vm111 = vcmask 441344
    %v112 = vsel %vm111, %v108, 0
    %v114 = vsel %vm111, %v110, 0
    %vm116 = vcmask 1045504
    %v118 = vsel %vm116, %v41, 0
    %120 = vmatpush.msra.mxu0 0.0
    %121 = vmatpush.msra.mxu0 0.0
    %122 = vmatpush.msra.mxu0 0.0
    %123 = vmatpush.msra.mxu0 0.0
    %124 = vmatpush.msra.mxu0 0.0
    %125 = vmatpush.msra.mxu0 0.0
    %126 = vmatpush.msra.mxu0 0.0
    %127 = vmatpush.msra.mxu0 0.0
    %128 = vmatpush.msra.mxu0 0.0
    %129 = vmatpush.msra.mxu0 %v118
    %130 = vmatpush.msra.mxu0 %v40
    %131 = vmatpush.msra.mxu0 %v39
    %132 = vmatpush.msra.mxu0 %v38
    %133 = vmatpush.msra.mxu0 %v37
    %134 = vmatpush.msra.mxu0 %v36
    %135 = vmatpush.msra.mxu0 %v35
    %136 = vmatmul.f32.gmra.mxu0 %v112
    %v137 = vpop.f32.mrf.mxu0
    %v138 = vadd.f32 0.0, %v137
    %139 = vmatmul.f32.gmra.mxu0 %v114
    %v140 = vpop.f32.mrf.mxu0
    %v141 = vadd.f32 0.0, %v140
    %142 = vdwg.mxu0
    %v143 = vsel %vm111, %v99, 0
    %v145 = vsel %vm111, %v100, 0
    %v148 = vsel %vm116, %v33, 0
    %150 = vmatpush.msra.mxu0 0.0
    %151 = vmatpush.msra.mxu0 0.0
    %152 = vmatpush.msra.mxu0 0.0
    %153 = vmatpush.msra.mxu0 0.0
    %154 = vmatpush.msra.mxu0 0.0
    %155 = vmatpush.msra.mxu0 0.0
    %156 = vmatpush.msra.mxu0 0.0
    %157 = vmatpush.msra.mxu0 0.0
    %158 = vmatpush.msra.mxu0 0.0
    %159 = vmatpush.msra.mxu0 %v148
    %160 = vmatpush.msra.mxu0 %v32
    %161 = vmatpush.msra.mxu0 %v31
    %162 = vmatpush.msra.mxu0 %v30
    %163 = vmatpush.msra.mxu0 %v29
    %164 = vmatpush.msra.mxu0 %v28
    %165 = vmatpush.msra.mxu0 %v27
    %166 = vmatmul.f32.gmra.mxu0 %v143
    %v167 = vpop.f32.mrf.mxu0
    %v168 = vadd.f32 %v138, %v167
    %169 = vmatmul.f32.gmra.mxu0 %v145
    %v170 = vpop.f32.mrf.mxu0
    %v171 = vadd.f32 %v141, %v170
    %172 = vdwg.mxu0
    %v173 = vrot.slane %v99, 2
    %v174 = vrot.slane %v100, 2
    %v175 = vsel %vm116, %v173, %v174
    %v176 = vrot.slane %v101, 2
    %v177 = vsel %vm116, %v174, %v176
    %v178 = vsel %vm111, %v175, 0
    %v180 = vsel %vm111, %v177, 0
    %v183 = vsel %vm116, %v49, 0
    %185 = vmatpush.msra.mxu0 0.0
    %186 = vmatpush.msra.mxu0 0.0
    %187 = vmatpush.msra.mxu0 0.0
    %188 = vmatpush.msra.mxu0 0.0
    %189 = vmatpush.msra.mxu0 0.0
    %190 = vmatpush.msra.mxu0 0.0
    %191 = vmatpush.msra.mxu0 0.0
    %192 = vmatpush.msra.mxu0 0.0
    %193 = vmatpush.msra.mxu0 0.0
    %194 = vmatpush.msra.mxu0 %v183
    %195 = vmatpush.msra.mxu0 %v48
    %196 = vmatpush.msra.mxu0 %v47
    %197 = vmatpush.msra.mxu0 %v46
    %198 = vmatpush.msra.mxu0 %v45
    %199 = vmatpush.msra.mxu0 %v44
    %200 = vmatpush.msra.mxu0 %v43
    %201 = vmatmul.f32.gmra.mxu0 %v178
    %v202 = vpop.f32.mrf.mxu0
    %v203 = vadd.f32 0.0, %v202
    %204 = vmatmul.f32.gmra.mxu0 %v180
    %v205 = vpop.f32.mrf.mxu0
    %v206 = vadd.f32 0.0, %v205
    %207 = vdwg.mxu0
    %v208 = vadd.f32 %v168, %v203
    %v209 = vadd.f32 %v171, %v206
    %v210 = vlaneseq
    %v211 = vshrl.u32 %v210, 7
    %v212 = vadd.s32 %v211, 8
    %v213 = vlaneseq
    %v214 = vand.u32 %v213, 127
    %vm215 = vcmp.ge.s32.totalorder %v211, 8
    %vm216 = vcmp.ge.s32.totalorder %v212, 8
    %v217 = vsel %vm215, 1, 0
    %v218 = vsel %vm216, 1, 0
    %v219 = vmul.u32 %v217, 8
    %v220 = vmul.u32 %v218, 8
    %v221 = vsub.s32 %v211, %v219
    %v222 = vsub.s32 %v212, %v220
    %v223 = vmul.u32 %v221, 2
    %v224 = vmul.u32 %v222, 2
    %v225 = vadd.s32 %v223, %v217
    %v226 = vadd.s32 %v224, %v218
    %vm227 = vcmp.eq.s32.totalorder %v214, %v225
    %vm228 = vcmp.eq.s32.totalorder %v214, %v226
    %v229 = vsel %vm227, 1.0, 0.0
    %v230 = vsel %vm228, 1.0, 0.0
    %vm231 = vcmask 130048
    %v233 = vsel %vm231, %v229, 0
    %v236 = vsel %vm231, %v230, 0
    %238 = vmatpush.msra.mxu0 0.0
    %239 = vmatpush.msra.mxu0 0.0
    %240 = vmatpush.msra.mxu0 0.0
    %241 = vmatpush.msra.mxu0 0.0
    %242 = vmatpush.msra.mxu0 0.0
    %243 = vmatpush.msra.mxu0 0.0
    %244 = vmatpush.msra.mxu0 0.0
    %245 = vmatpush.msra.mxu0 0.0
    %246 = vmatpush.msra.mxu0 0.0
    %247 = vmatpush.msra.mxu0 0.0
    %248 = vmatpush.msra.mxu0 0.0
    %249 = vmatpush.msra.mxu0 0.0
    %250 = vmatpush.msra.mxu0 0.0
    %251 = vmatpush.msra.mxu0 0.0
    %252 = vmatpush.msra.mxu0 %v209
    %253 = vmatpush.msra.mxu0 %v208
    %254 = vmatmul.f32.gmra.mxu0 %v233
    %v255 = vpop.f32.mrf.mxu0
    %v256 = vadd.f32 0.0, %v255
    %257 = vmatmul.f32.gmra.mxu0 %v236
    %v258 = vpop.f32.mrf.mxu0
    %v259 = vadd.f32 0.0, %v258
    %260 = vdwg.mxu0
    %262 = vrot.lane.b32.xlu0 %v256, 64
    %v263 = vpop.permute.xlu0 %262
    %v265 = vmax.f32 %v256, %v263
    %267 = vrot.lane.b32.xlu0 %v259, 64
    %v268 = vpop.permute.xlu0 %267
    %v270 = vmax.f32 %v259, %v268
    %v271 = vmax.f32 %v265, %v270
    %v273 = vperm.slane %v96, 0
    %v275 = vadd.f32 %v271, %v273
    %v276 = vmax.f32 %v275, 0.0
    %v278 = vrot.slane %v276, 1
    %vm279 = vcmask 523264
    %v280 = vsel %vm279, %v278, 0
    %282 = vmatpush.msra.mxu0 0.0
    %283 = vmatpush.msra.mxu0 0.0
    %284 = vmatpush.msra.mxu0 0.0
    %285 = vmatpush.msra.mxu0 0.0
    %286 = vmatpush.msra.mxu0 0.0
    %287 = vmatpush.msra.mxu0 0.0
    %288 = vmatpush.msra.mxu0 0.0
    %289 = vmatpush.msra.mxu0 0.0
    %290 = vmatpush.msra.mxu0 %v66
    %291 = vmatpush.msra.mxu0 %v65
    %292 = vmatpush.msra.mxu0 %v64
    %293 = vmatpush.msra.mxu0 %v63
    %294 = vmatpush.msra.mxu0 %v62
    %295 = vmatpush.msra.mxu0 %v61
    %296 = vmatpush.msra.mxu0 %v60
    %297 = vmatpush.msra.mxu0 %v59
    %298 = vmatmul.f32.gmra.mxu0 %v280
    %v299 = vpop.f32.mrf.mxu0
    %v300 = vadd.f32 0.0, %v299
    %301 = vdwg.mxu0
    %v302 = vsel %vm279, %v276, 0
    %304 = vmatpush.msra.mxu0 0.0
    %305 = vmatpush.msra.mxu0 0.0
    %306 = vmatpush.msra.mxu0 0.0
    %307 = vmatpush.msra.mxu0 0.0
    %308 = vmatpush.msra.mxu0 0.0
    %309 = vmatpush.msra.mxu0 0.0
    %310 = vmatpush.msra.mxu0 0.0
    %311 = vmatpush.msra.mxu0 0.0
    %312 = vmatpush.msra.mxu0 %v57
    %313 = vmatpush.msra.mxu0 %v56
    %314 = vmatpush.msra.mxu0 %v55
    %315 = vmatpush.msra.mxu0 %v54
    %316 = vmatpush.msra.mxu0 %v53
    %317 = vmatpush.msra.mxu0 %v52
    %318 = vmatpush.msra.mxu0 %v51
    %319 = vmatpush.msra.mxu0 %v50
    %320 = vmatmul.f32.gmra.mxu0 %v302
    %v321 = vpop.f32.mrf.mxu0
    %v322 = vadd.f32 %v300, %v321
    %323 = vdwg.mxu0
    %v324 = vrot.slane %v276, 2
    %v325 = vsel %vm279, %v324, 0
    %327 = vmatpush.msra.mxu0 0.0
    %328 = vmatpush.msra.mxu0 0.0
    %329 = vmatpush.msra.mxu0 0.0
    %330 = vmatpush.msra.mxu0 0.0
    %331 = vmatpush.msra.mxu0 0.0
    %332 = vmatpush.msra.mxu0 0.0
    %333 = vmatpush.msra.mxu0 0.0
    %334 = vmatpush.msra.mxu0 0.0
    %335 = vmatpush.msra.mxu0 %v75
    %336 = vmatpush.msra.mxu0 %v74
    %337 = vmatpush.msra.mxu0 %v73
    %338 = vmatpush.msra.mxu0 %v72
    %339 = vmatpush.msra.mxu0 %v71
    %340 = vmatpush.msra.mxu0 %v70
    %341 = vmatpush.msra.mxu0 %v69
    %342 = vmatpush.msra.mxu0 %v68
    %343 = vmatmul.f32.gmra.mxu0 %v325
    %v344 = vpop.f32.mrf.mxu0
    %v345 = vadd.f32 0.0, %v344
    %346 = vdwg.mxu0
    %v347 = vadd.f32 %v322, %v345
    %vm348 = vcmp.ge.s32.totalorder %v211, 3
    %v349 = vsel %vm348, 1, 0
    %v350 = vmul.u32 %v349, 3
    %v351 = vsub.s32 %v211, %v350
    %v352 = vmul.u32 %v351, 2
    %v353 = vadd.s32 %v352, %v349
    %vm354 = vcmp.eq.s32.totalorder %v214, %v353
    %v355 = vsel %vm354, 1.0, 0.0
    %vm356 = vcmask 48128
    %v358 = vsel %vm356, %v355, 0
    %v361 = vsel %vm116, %v347, 0
    %363 = vmatpush.msra.mxu0 0.0
    %364 = vmatpush.msra.mxu0 0.0
    %365 = vmatpush.msra.mxu0 0.0
    %366 = vmatpush.msra.mxu0 0.0
    %367 = vmatpush.msra.mxu0 0.0
    %368 = vmatpush.msra.mxu0 0.0
    %369 = vmatpush.msra.mxu0 0.0
    %370 = vmatpush.msra.mxu0 0.0
    %371 = vmatpush.msra.mxu0 0.0
    %372 = vmatpush.msra.mxu0 0.0
    %373 = vmatpush.msra.mxu0 0.0
    %374 = vmatpush.msra.mxu0 0.0
    %375 = vmatpush.msra.mxu0 0.0
    %376 = vmatpush.msra.mxu0 0.0
    %377 = vmatpush.msra.mxu0 0.0
    %378 = vmatpush.msra.mxu0 %v361
    %379 = vmatmul.f32.gmra.mxu0 %v358
    %v380 = vpop.f32.mrf.mxu0
    %v381 = vadd.f32 0.0, %v380
    %382 = vdwg.mxu0
    %384 = vrot.lane.b32.xlu0 %v381, 80
    %v385 = vpop.permute.xlu0 %384
    %v387 = vmax.f32 %v381, %v385
    %v389 = vrot.slane %v387, 3
    %v391 = vmax.f32 %v387, %v389
    %v393 = vperm.slane %v97, 0
    %v395 = vadd.f32 %v391, %v393
    %v396 = vmax.f32 %v395, 0.0
    %vm397 = vcmask 392192
    %v399 = vsel %vm397, %v396, 0
    %401 = vmatpush.msra.mxu0 0.0
    %402 = vmatpush.msra.mxu0 0.0
    %403 = vmatpush.msra.mxu0 0.0
    %404 = vmatpush.msra.mxu0 0.0
    %405 = vmatpush.msra.mxu0 0.0
    %406 = vmatpush.msra.mxu0 0.0
    %407 = vmatpush.msra.mxu0 0.0
    %408 = vmatpush.msra.mxu0 0.0
    %409 = vmatpush.msra.mxu0 0.0
    %410 = vmatpush.msra.mxu0 0.0
    %411 = vmatpush.msra.mxu0 %v81
    %412 = vmatpush.msra.mxu0 %v80
    %413 = vmatpush.msra.mxu0 %v79
    %414 = vmatpush.msra.mxu0 %v78
    %415 = vmatpush.msra.mxu0 %v77
    %416 = vmatpush.msra.mxu0 %v76
    %417 = vmatmul.f32.gmra.mxu0 %v399
    %v418 = vpop.f32.mrf.mxu0
    %v419 = vadd.f32 0.0, %v418
    %420 = vdwg.mxu0
    %v421 = vadd.f32 %v98, %v419
    %v422 = vrot.slane %v396, 1
    %v423 = vsel %vm397, %v422, 0
    %425 = vmatpush.msra.mxu0 0.0
    %426 = vmatpush.msra.mxu0 0.0
    %427 = vmatpush.msra.mxu0 0.0
    %428 = vmatpush.msra.mxu0 0.0
    %429 = vmatpush.msra.mxu0 0.0
    %430 = vmatpush.msra.mxu0 0.0
    %431 = vmatpush.msra.mxu0 0.0
    %432 = vmatpush.msra.mxu0 0.0
    %433 = vmatpush.msra.mxu0 0.0
    %434 = vmatpush.msra.mxu0 0.0
    %435 = vmatpush.msra.mxu0 %v88
    %436 = vmatpush.msra.mxu0 %v87
    %437 = vmatpush.msra.mxu0 %v86
    %438 = vmatpush.msra.mxu0 %v85
    %439 = vmatpush.msra.mxu0 %v84
    %440 = vmatpush.msra.mxu0 %v83
    %441 = vmatmul.f32.gmra.mxu0 %v423
    %v442 = vpop.f32.mrf.mxu0
    %v443 = vadd.f32 0.0, %v442
    %444 = vdwg.mxu0
    %v445 = vadd.f32 %v421, %v443
    %v446 = vrot.slane %v396, 2
    %v447 = vsel %vm397, %v446, 0
    %449 = vmatpush.msra.mxu0 0.0
    %450 = vmatpush.msra.mxu0 0.0
    %451 = vmatpush.msra.mxu0 0.0
    %452 = vmatpush.msra.mxu0 0.0
    %453 = vmatpush.msra.mxu0 0.0
    %454 = vmatpush.msra.mxu0 0.0
    %455 = vmatpush.msra.mxu0 0.0
    %456 = vmatpush.msra.mxu0 0.0
    %457 = vmatpush.msra.mxu0 0.0
    %458 = vmatpush.msra.mxu0 0.0
    %459 = vmatpush.msra.mxu0 %v95
    %460 = vmatpush.msra.mxu0 %v94
    %461 = vmatpush.msra.mxu0 %v93
    %462 = vmatpush.msra.mxu0 %v92
    %463 = vmatpush.msra.mxu0 %v91
    %464 = vmatpush.msra.mxu0 %v90
    %465 = vmatmul.f32.gmra.mxu0 %v447
    %v466 = vpop.f32.mrf.mxu0
    %v467 = vadd.f32 0.0, %v466
    %468 = vdwg.mxu0
    %v469 = vadd.f32 %v445, %v467
    %vm470 = vcmask 73728
    %471 = vst.msk [vmem:[#allocation2] sm:$0x1] %vm470, %v469
    %s472 = scalar_lea.vmem %s0, 24
    %v473 = vld [vmem:[%s472] sm:$0xff]
    %v474 = vld [vmem:[%s472 + $0x8] sm:$0xff]
    %v475 = vld [vmem:[%s472 + $0x10] sm:$0x3]
    %v479 = vrot.slane %v473, 1
    %v480 = vrot.slane %v474, 1
    %v481 = vsel %vm105, %v479, %v480
    %v482 = vrot.slane %v475, 1
    %v483 = vsel %vm105, %v480, %v482
    %v484 = vsel %vm111, %v481, 0
    %v486 = vsel %vm111, %v483, 0
    %488 = vmatpush.msra.mxu0 0.0
    %489 = vmatpush.msra.mxu0 0.0
    %490 = vmatpush.msra.mxu0 0.0
    %491 = vmatpush.msra.mxu0 0.0
    %492 = vmatpush.msra.mxu0 0.0
    %493 = vmatpush.msra.mxu0 0.0
    %494 = vmatpush.msra.mxu0 0.0
    %495 = vmatpush.msra.mxu0 0.0
    %496 = vmatpush.msra.mxu0 0.0
    %497 = vmatpush.msra.mxu0 %v118
    %498 = vmatpush.msra.mxu0 %v40
    %499 = vmatpush.msra.mxu0 %v39
    %500 = vmatpush.msra.mxu0 %v38
    %501 = vmatpush.msra.mxu0 %v37
    %502 = vmatpush.msra.mxu0 %v36
    %503 = vmatpush.msra.mxu0 %v35
    %504 = vmatmul.f32.gmra.mxu0 %v484
    %v505 = vpop.f32.mrf.mxu0
    %v506 = vadd.f32 0.0, %v505
    %507 = vmatmul.f32.gmra.mxu0 %v486
    %v508 = vpop.f32.mrf.mxu0
    %v509 = vadd.f32 0.0, %v508
    %510 = vdwg.mxu0
    %v511 = vsel %vm111, %v473, 0
    %v513 = vsel %vm111, %v474, 0
    %515 = vmatpush.msra.mxu0 0.0
    %516 = vmatpush.msra.mxu0 0.0
    %517 = vmatpush.msra.mxu0 0.0
    %518 = vmatpush.msra.mxu0 0.0
    %519 = vmatpush.msra.mxu0 0.0
    %520 = vmatpush.msra.mxu0 0.0
    %521 = vmatpush.msra.mxu0 0.0
    %522 = vmatpush.msra.mxu0 0.0
    %523 = vmatpush.msra.mxu0 0.0
    %524 = vmatpush.msra.mxu0 %v148
    %525 = vmatpush.msra.mxu0 %v32
    %526 = vmatpush.msra.mxu0 %v31
    %527 = vmatpush.msra.mxu0 %v30
    %528 = vmatpush.msra.mxu0 %v29
    %529 = vmatpush.msra.mxu0 %v28
    %530 = vmatpush.msra.mxu0 %v27
    %531 = vmatmul.f32.gmra.mxu0 %v511
    %v532 = vpop.f32.mrf.mxu0
    %v533 = vadd.f32 %v506, %v532
    %534 = vmatmul.f32.gmra.mxu0 %v513
    %v535 = vpop.f32.mrf.mxu0
    %v536 = vadd.f32 %v509, %v535
    %537 = vdwg.mxu0
    %v538 = vrot.slane %v473, 2
    %v539 = vrot.slane %v474, 2
    %v540 = vsel %vm116, %v538, %v539
    %v541 = vrot.slane %v475, 2
    %v542 = vsel %vm116, %v539, %v541
    %v543 = vsel %vm111, %v540, 0
    %v545 = vsel %vm111, %v542, 0
    %547 = vmatpush.msra.mxu0 0.0
    %548 = vmatpush.msra.mxu0 0.0
    %549 = vmatpush.msra.mxu0 0.0
    %550 = vmatpush.msra.mxu0 0.0
    %551 = vmatpush.msra.mxu0 0.0
    %552 = vmatpush.msra.mxu0 0.0
    %553 = vmatpush.msra.mxu0 0.0
    %554 = vmatpush.msra.mxu0 0.0
    %555 = vmatpush.msra.mxu0 0.0
    %556 = vmatpush.msra.mxu0 %v183
    %557 = vmatpush.msra.mxu0 %v48
    %558 = vmatpush.msra.mxu0 %v47
    %559 = vmatpush.msra.mxu0 %v46
    %560 = vmatpush.msra.mxu0 %v45
    %561 = vmatpush.msra.mxu0 %v44
    %562 = vmatpush.msra.mxu0 %v43
    %563 = vmatmul.f32.gmra.mxu0 %v543
    %v564 = vpop.f32.mrf.mxu0
    %v565 = vadd.f32 0.0, %v564
    %566 = vmatmul.f32.gmra.mxu0 %v545
    %v567 = vpop.f32.mrf.mxu0
    %v568 = vadd.f32 0.0, %v567
    %569 = vdwg.mxu0
    %v570 = vadd.f32 %v533, %v565
    %v571 = vadd.f32 %v536, %v568
    %572 = vmatpush.msra.mxu0 0.0
    %573 = vmatpush.msra.mxu0 0.0
    %574 = vmatpush.msra.mxu0 0.0
    %575 = vmatpush.msra.mxu0 0.0
    %576 = vmatpush.msra.mxu0 0.0
    %577 = vmatpush.msra.mxu0 0.0
    %578 = vmatpush.msra.mxu0 0.0
    %579 = vmatpush.msra.mxu0 0.0
    %580 = vmatpush.msra.mxu0 0.0
    %581 = vmatpush.msra.mxu0 0.0
    %582 = vmatpush.msra.mxu0 0.0
    %583 = vmatpush.msra.mxu0 0.0
    %584 = vmatpush.msra.mxu0 0.0
    %585 = vmatpush.msra.mxu0 0.0
    %586 = vmatpush.msra.mxu0 %v571
    %587 = vmatpush.msra.mxu0 %v570
    %588 = vmatmul.f32.gmra.mxu0 %v233
    %v589 = vpop.f32.mrf.mxu0
    %v590 = vadd.f32 0.0, %v589
    %591 = vmatmul.f32.gmra.mxu0 %v236
    %v592 = vpop.f32.mrf.mxu0
    %v593 = vadd.f32 0.0, %v592
    %594 = vdwg.mxu0
    %596 = vrot.lane.b32.xlu0 %v590, 64
    %v597 = vpop.permute.xlu0 %596
    %v599 = vmax.f32 %v590, %v597
    %601 = vrot.lane.b32.xlu0 %v593, 64
    %v602 = vpop.permute.xlu0 %601
    %v604 = vmax.f32 %v593, %v602
    %v605 = vmax.f32 %v599, %v604
    %v606 = vadd.f32 %v605, %v273
    %v607 = vmax.f32 %v606, 0.0
    %v609 = vrot.slane %v607, 1
    %v610 = vsel %vm279, %v609, 0
    %612 = vmatpush.msra.mxu0 0.0
    %613 = vmatpush.msra.mxu0 0.0
    %614 = vmatpush.msra.mxu0 0.0
    %615 = vmatpush.msra.mxu0 0.0
    %616 = vmatpush.msra.mxu0 0.0
    %617 = vmatpush.msra.mxu0 0.0
    %618 = vmatpush.msra.mxu0 0.0
    %619 = vmatpush.msra.mxu0 0.0
    %620 = vmatpush.msra.mxu0 %v66
    %621 = vmatpush.msra.mxu0 %v65
    %622 = vmatpush.msra.mxu0 %v64
    %623 = vmatpush.msra.mxu0 %v63
    %624 = vmatpush.msra.mxu0 %v62
    %625 = vmatpush.msra.mxu0 %v61
    %626 = vmatpush.msra.mxu0 %v60
    %627 = vmatpush.msra.mxu0 %v59
    %628 = vmatmul.f32.gmra.mxu0 %v610
    %v629 = vpop.f32.mrf.mxu0
    %v630 = vadd.f32 0.0, %v629
    %631 = vdwg.mxu0
    %v632 = vsel %vm279, %v607, 0
    %634 = vmatpush.msra.mxu0 0.0
    %635 = vmatpush.msra.mxu0 0.0
    %636 = vmatpush.msra.mxu0 0.0
    %637 = vmatpush.msra.mxu0 0.0
    %638 = vmatpush.msra.mxu0 0.0
    %639 = vmatpush.msra.mxu0 0.0
    %640 = vmatpush.msra.mxu0 0.0
    %641 = vmatpush.msra.mxu0 0.0
    %642 = vmatpush.msra.mxu0 %v57
    %643 = vmatpush.msra.mxu0 %v56
    %644 = vmatpush.msra.mxu0 %v55
    %645 = vmatpush.msra.mxu0 %v54
    %646 = vmatpush.msra.mxu0 %v53
    %647 = vmatpush.msra.mxu0 %v52
    %648 = vmatpush.msra.mxu0 %v51
    %649 = vmatpush.msra.mxu0 %v50
    %650 = vmatmul.f32.gmra.mxu0 %v632
    %v651 = vpop.f32.mrf.mxu0
    %v652 = vadd.f32 %v630, %v651
    %653 = vdwg.mxu0
    %v654 = vrot.slane %v607, 2
    %v655 = vsel %vm279, %v654, 0
    %657 = vmatpush.msra.mxu0 0.0
    %658 = vmatpush.msra.mxu0 0.0
    %659 = vmatpush.msra.mxu0 0.0
    %660 = vmatpush.msra.mxu0 0.0
    %661 = vmatpush.msra.mxu0 0.0
    %662 = vmatpush.msra.mxu0 0.0
    %663 = vmatpush.msra.mxu0 0.0
    %664 = vmatpush.msra.mxu0 0.0
    %665 = vmatpush.msra.mxu0 %v75
    %666 = vmatpush.msra.mxu0 %v74
    %667 = vmatpush.msra.mxu0 %v73
    %668 = vmatpush.msra.mxu0 %v72
    %669 = vmatpush.msra.mxu0 %v71
    %670 = vmatpush.msra.mxu0 %v70
    %671 = vmatpush.msra.mxu0 %v69
    %672 = vmatpush.msra.mxu0 %v68
    %673 = vmatmul.f32.gmra.mxu0 %v655
    %v674 = vpop.f32.mrf.mxu0
    %v675 = vadd.f32 0.0, %v674
    %676 = vdwg.mxu0
    %v677 = vadd.f32 %v652, %v675
    %v679 = vsel %vm116, %v677, 0
    %681 = vmatpush.msra.mxu0 0.0
    %682 = vmatpush.msra.mxu0 0.0
    %683 = vmatpush.msra.mxu0 0.0
    %684 = vmatpush.msra.mxu0 0.0
    %685 = vmatpush.msra.mxu0 0.0
    %686 = vmatpush.msra.mxu0 0.0
    %687 = vmatpush.msra.mxu0 0.0
    %688 = vmatpush.msra.mxu0 0.0
    %689 = vmatpush.msra.mxu0 0.0
    %690 = vmatpush.msra.mxu0 0.0
    %691 = vmatpush.msra.mxu0 0.0
    %692 = vmatpush.msra.mxu0 0.0
    %693 = vmatpush.msra.mxu0 0.0
    %694 = vmatpush.msra.mxu0 0.0
    %695 = vmatpush.msra.mxu0 0.0
    %696 = vmatpush.msra.mxu0 %v679
    %697 = vmatmul.f32.gmra.mxu0 %v358
    %v698 = vpop.f32.mrf.mxu0
    %v699 = vadd.f32 0.0, %v698
    %700 = vdwg.mxu0
    %702 = vrot.lane.b32.xlu0 %v699, 80
    %v703 = vpop.permute.xlu0 %702
    %v705 = vmax.f32 %v699, %v703
    %v707 = vrot.slane %v705, 3
    %v709 = vmax.f32 %v705, %v707
    %v710 = vadd.f32 %v709, %v393
    %v711 = vmax.f32 %v710, 0.0
    %v713 = vsel %vm397, %v711, 0
    %715 = vmatpush.msra.mxu0 0.0
    %716 = vmatpush.msra.mxu0 0.0
    %717 = vmatpush.msra.mxu0 0.0
    %718 = vmatpush.msra.mxu0 0.0
    %719 = vmatpush.msra.mxu0 0.0
    %720 = vmatpush.msra.mxu0 0.0
    %721 = vmatpush.msra.mxu0 0.0
    %722 = vmatpush.msra.mxu0 0.0
    %723 = vmatpush.msra.mxu0 0.0
    %724 = vmatpush.msra.mxu0 0.0
    %725 = vmatpush.msra.mxu0 %v81
    %726 = vmatpush.msra.mxu0 %v80
    %727 = vmatpush.msra.mxu0 %v79
    %728 = vmatpush.msra.mxu0 %v78
    %729 = vmatpush.msra.mxu0 %v77
    %730 = vmatpush.msra.mxu0 %v76
    %731 = vmatmul.f32.gmra.mxu0 %v713
    %v732 = vpop.f32.mrf.mxu0
    %v733 = vadd.f32 0.0, %v732
    %734 = vdwg.mxu0
    %v735 = vadd.f32 %v98, %v733
    %v736 = vrot.slane %v711, 1
    %v737 = vsel %vm397, %v736, 0
    %739 = vmatpush.msra.mxu0 0.0
    %740 = vmatpush.msra.mxu0 0.0
    %741 = vmatpush.msra.mxu0 0.0
    %742 = vmatpush.msra.mxu0 0.0
    %743 = vmatpush.msra.mxu0 0.0
    %744 = vmatpush.msra.mxu0 0.0
    %745 = vmatpush.msra.mxu0 0.0
    %746 = vmatpush.msra.mxu0 0.0
    %747 = vmatpush.msra.mxu0 0.0
    %748 = vmatpush.msra.mxu0 0.0
    %749 = vmatpush.msra.mxu0 %v88
    %750 = vmatpush.msra.mxu0 %v87
    %751 = vmatpush.msra.mxu0 %v86
    %752 = vmatpush.msra.mxu0 %v85
    %753 = vmatpush.msra.mxu0 %v84
    %754 = vmatpush.msra.mxu0 %v83
    %755 = vmatmul.f32.gmra.mxu0 %v737
    %v756 = vpop.f32.mrf.mxu0
    %v757 = vadd.f32 0.0, %v756
    %758 = vdwg.mxu0
    %v759 = vadd.f32 %v735, %v757
    %v760 = vrot.slane %v711, 2
    %v761 = vsel %vm397, %v760, 0
    %763 = vmatpush.msra.mxu0 0.0
    %764 = vmatpush.msra.mxu0 0.0
    %765 = vmatpush.msra.mxu0 0.0
    %766 = vmatpush.msra.mxu0 0.0
    %767 = vmatpush.msra.mxu0 0.0
    %768 = vmatpush.msra.mxu0 0.0
    %769 = vmatpush.msra.mxu0 0.0
    %770 = vmatpush.msra.mxu0 0.0
    %771 = vmatpush.msra.mxu0 0.0
    %772 = vmatpush.msra.mxu0 0.0
    %773 = vmatpush.msra.mxu0 %v95
    %774 = vmatpush.msra.mxu0 %v94
    %775 = vmatpush.msra.mxu0 %v93
    %776 = vmatpush.msra.mxu0 %v92
    %777 = vmatpush.msra.mxu0 %v91
    %778 = vmatpush.msra.mxu0 %v90
    %779 = vmatmul.f32.gmra.mxu0 %v761
    %v780 = vpop.f32.mrf.mxu0
    %v781 = vadd.f32 0.0, %v780
    %782 = vdwg.mxu0
    %v783 = vadd.f32 %v759, %v781
    %784 = vst.msk [vmem:[#allocation2 + $0x1] sm:$0x1] %vm470, %v783
    // Predicated region
    $region30: #{dynanet_forward.1} parent=1 // pred_check
      _
    $region31: #{dynanet_forward.1} parent=1 // pred_check_branch
      %786 = sbr.rel (0) target = $region33
    $region32: #{dynanet_forward.1} parent=1 // pred_region
      %788 = vsyncadd [#allocation3], 0
      %s790 = sshll.u32 [#allocation2], 4
      %s791 = int_to_ptr.vmem [resolvable:$true] %s790
      %s792 = sshll.u32 %s7, 4
      %s793 = int_to_ptr.hbm [resolvable:$true] %s792
      %795 = dma.vmem_to_hbm [thread:$0]  %s791, 32, %s793, [#allocation3]
    $region33: #{dynanet_forward.1} parent=1 // pred_fallthru
      _
    // Predicated region
    $region34: #{dynanet_forward.1} parent=1 // pred_check
      _
    $region35: #{dynanet_forward.1} parent=1 // pred_check_branch
      %797 = sbr.rel (0) target = $region37
    $region36: #{dynanet_forward.1} parent=1 // pred_region
      %799 = dma.done [#allocation3], 32
    $region37: #{dynanet_forward.1} parent=1 // pred_fallthru
      _
    %800 = vsyncpa [#allocation3], 1

</llo_original>
